<compile_context>
chip_gen: v7x
topology: tpu7x:2x2x1
jax: 0.10.0
libtpu: 0.0.40
codegen_flags: <defaults>
</compile_context>

<pallas_src>
import functools

import jax
import jax.numpy as jnp
from jax.experimental import pallas as pl
from jax.experimental.pallas import tpu as pltpu


def _pad_kernel(x_ref, o_ref, *, top, left, h, w):
    # x_ref: (rows_block, H, W) VMEM tile
    # o_ref: (rows_block, H_out, W_out) VMEM tile
    # Zero the whole padded slab, then overwrite the interior window.
    o_ref[...] = jnp.zeros_like(o_ref)
    o_ref[:, top:top + h, left:left + w] = x_ref[...]


def _choose_rows_block(nc: int, out_bytes_per_row: int) -> int:
    """Largest divisor of nc with <=~2 MiB output tile and (if possible) grid >= 2."""
    budget = 2 << 20  # ~2 MiB per output tile (v7x-safe with double buffering)
    best = 1
    for d in range(1, nc + 1):
        if nc % d:
            continue
        if d * out_bytes_per_row > budget:
            break
        if nc == 1 or nc // d >= 2:
            best = d
    return best


def pad_to_multiple_of(x: jax.Array, n: int) -> jax.Array:
    """Zero-pad NCHW input so spatial dims become multiples of n (PyTorch F.pad split)."""
    N, C, H, W = x.shape
    pad_x = (n - W % n) % n
    pad_y = (n - H % n) % n
    if pad_x == 0 and pad_y == 0:
        return x  # nothing to do; semantics identical to F.pad with zero pads

    left, top = pad_x // 2, pad_y // 2
    H_out, W_out = H + pad_y, W + pad_x

    NC = N * C
    x3 = x.reshape(NC, H, W)  # free reshape of leading dims

    itemsize = jnp.dtype(x.dtype).itemsize
    rows_block = _choose_rows_block(NC, H_out * W_out * itemsize)
    grid = (NC // rows_block,)

    kernel = functools.partial(_pad_kernel, top=top, left=left, h=H, w=W)

    out3 = pl.pallas_call(
        kernel,
        out_shape=jax.ShapeDtypeStruct((NC, H_out, W_out), x.dtype),
        grid=grid,
        in_specs=[
            pl.BlockSpec((rows_block, H, W), lambda i: (i, 0, 0)),
        ],
        out_specs=pl.BlockSpec((rows_block, H_out, W_out), lambda i: (i, 0, 0)),
        compiler_params=pltpu.CompilerParams(
            dimension_semantics=("parallel",),
        ),
        cost_estimate=pl.CostEstimate(
            flops=0,
            transcendentals=0,
            bytes_accessed=(NC * H * W + NC * H_out * W_out) * itemsize,
        ),
    )(x3)

    return out3.reshape(N, C, H_out, W_out)


if __name__ == "__main__":
    # Deterministic example input, NCHW (batch=2, channels=4, spatial=16x16).
    key = jax.random.PRNGKey(0)
    x = jax.random.uniform(key, (2, 4, 16, 16), dtype=jnp.float32)

    # n=12 -> pad_x = pad_y = 8 (4 on each side): output spatial 24x24.
    n = 12
    out = pad_to_multiple_of(x, n)
    jax.block_until_ready(out)

    pad_x = (n - x.shape[3] % n) % n
    pad_y = (n - x.shape[2] % n) % n
    ref = jnp.pad(
        x,
        ((0, 0), (0, 0),
         (pad_y // 2, pad_y - pad_y // 2),
         (pad_x // 2, pad_x - pad_x // 2)),
    )
    assert out.shape == ref.shape and out.dtype == x.dtype
    assert jnp.allclose(out, ref, atol=0.0, rtol=0.0)

    # Already-multiple case (n=8): identity path.
    out_id = pad_to_multiple_of(x, 8)
    jax.block_until_ready(out_id)
    assert out_id.shape == x.shape
    assert jnp.allclose(out_id, x)

    print("KERNEL_OK")
</pallas_src>

<mosaic_0001>
module attributes {stable_mosaic.version = 11 : i64} {
  func.func @_pad_kernel(%arg0: i32, %arg1: memref<4x16x16xf32, #tpu.memory_space<vmem>>, %arg2: memref<4x24x24xf32, #tpu.memory_space<vmem>>) attributes {dimension_semantics = [#tpu.dimension_semantics<parallel>], iteration_bounds = array<i64: 2>, scalar_prefetch = 0 : i64, scratch_operands = 0 : i64, tpu.core_type = #tpu.core_type<tc>, window_params = [{transform_indices = @transform_0, window_bounds = array<i64: 4, 16, 16>}, {transform_indices = @transform_1, window_bounds = array<i64: 4, 24, 24>}]} {
    %cst = arith.constant 0.000000e+00 : f32
    %0 = vector.broadcast %cst : f32 to vector<4x24x24xf32>
    %c0 = arith.constant 0 : index
    %c0_0 = arith.constant 0 : index
    %c0_1 = arith.constant 0 : index
    %1 = vector.load %arg2[%c0, %c0_0, %c0_1] : memref<4x24x24xf32, #tpu.memory_space<vmem>>, vector<4x24x24xf32>
    tpu.vector_store %arg2[%c0, %c0_0, %c0_1], %0 {strides = array<i32>} : memref<4x24x24xf32, #tpu.memory_space<vmem>>, vector<4x24x24xf32>,
    %c0_2 = arith.constant 0 : index
    %c0_3 = arith.constant 0 : index
    %c0_4 = arith.constant 0 : index
    %2 = vector.load %arg1[%c0_2, %c0_3, %c0_4] : memref<4x16x16xf32, #tpu.memory_space<vmem>>, vector<4x16x16xf32>
    %c0_5 = arith.constant 0 : index
    %c4 = arith.constant 4 : index
    %c4_6 = arith.constant 4 : index
    %3 = vector.load %arg2[%c0_5, %c4, %c4_6] : memref<4x24x24xf32, #tpu.memory_space<vmem>>, vector<4x16x16xf32>
    tpu.vector_store %arg2[%c0_5, %c4, %c4_6], %2 {strides = array<i32>} : memref<4x24x24xf32, #tpu.memory_space<vmem>>, vector<4x16x16xf32>,
    return
  }
  func.func @transform_0(%arg0: i32) -> (i32, i32, i32) {
    %c0_i32 = arith.constant 0 : i32
    %c0_i32_0 = arith.constant 0 : i32
    %c0_i32_1 = arith.constant 0 : i32
    return %arg0, %c0_i32, %c0_i32_0 : i32, i32, i32
  }
  func.func @transform_1(%arg0: i32) -> (i32, i32, i32) {
    %c0_i32 = arith.constant 0 : i32
    %c0_i32_0 = arith.constant 0 : i32
    %c0_i32_1 = arith.constant 0 : i32
    return %arg0, %c0_i32, %c0_i32_0 : i32, i32, i32
  }
}

</mosaic_0001>

<llo_original>
// kernel: tpu_custom_call.1
$region0: #{tpu_custom_call.1}
  #allocation0 [shape = 'u32[]', space=smem, size = 0x4, offset = 0x4, fixed_abs, tag = 'smem constant byte address 0x4 - core index']
  #allocation1 [shape = 'u32[144,128]{1,0:T(1,128)}', space=vmem, size = 0x12000, scoped, tag = 'internal scratch']
  %s0 = inlined_call_operand.hbm [shape: f32[8,16,16], index: 0, kind: input, shape index: {}]
  %s1 = inlined_call_operand.hbm [shape: f32[8,24,24], index: 1, kind: output, shape index: {}]
  %s2 = sld [smem:[#allocation0]]
  $region41: #{tpu_custom_call.1} parent=0
    _
  %s4 = ssub.s32 1, %s2
  %s5 = scalar_select 0, %s4, %s2
  $region1: #{tpu_custom_call.1} parent=0
    #allocation2 [shape = 'u8[65536]{0}', space=vmem, size = 0x10000, scoped, tag = 'input window, operand 0']
    #allocation3 [shape = 's32[2]{0}', space=sflag, size = 0x8, scoped, tag = 'scoped memory for tpu_custom_call.1']
    #allocation4 [shape = 's32[2]{0}', space=sflag, size = 0x8, scoped, tag = 'scoped memory for tpu_custom_call.1']
    #allocation5 [shape = 'u8[98304]{0}', space=vmem, size = 0x18000, scoped, tag = 'output window, operand 0']
    %6 = vsyncpa [#allocation3], 0
    %s7 = scalar_lea.sflag [#allocation3], 1
    %8 = vsyncpa %s7, 0
    %9 = vsyncpa [#allocation4], 0
    %s10 = scalar_lea.sflag [#allocation4], 1
    %11 = vsyncpa %s10, 0
    loop: start=0, step=1, limit=4
    $region2: #{tpu_custom_call.1} parent=1 // loop_pre_header
      _
    $region3: #{tpu_custom_call.1} parent=1 // loop_header
      %s13 = sphi 0, %s17
      %p14 = scmp.ge.s32.totalorder %s13, 4
      %s23 = sphi 0, %s25
      %s26 = sphi 0, %s23
      %s27 = sphi 0, %s26
      %s43 = sphi 0, %s27
      %s49 = sphi 0, %s51
      %s52 = sphi 0, %s49
      %s53 = sphi 0, %s52
      %s69 = sphi 0, %s53
    $region4: #{tpu_custom_call.1} parent=1 // loop_header_branch
      %16 = sbr.rel (%p14) target = $region8
    $region5: #{tpu_custom_call.1} parent=1 // loop_body
      %s18 = ssub.s32 %s13, 1
      %s19 = ssub.s32 %s13, 2
      %s20 = sadd.s32 %s13, 1
      %s21 = ssub.s32 %s13, %s20
      %p22 = scmp.eq.s32.totalorder %s21, 0
      %s24 = sadd.s32 %s23, 1
      %s25 = scalar_select %p22, %s23, %s24
      %p28 = pneg %p22
      %p29 = scmp.eq.s32.totalorder %s13, 1
      %p30 = por %p28, %p29
      %p31 = scmp.ne.s32.totalorder %s23, %s26
      %p32 = scmp.eq.s32.totalorder %s13, 0
      %p33 = por %p31, %p32
      %p34 = scmp.ne.s32.totalorder %s23, %s26
      %p35 = scmp.eq.s32.totalorder %s18, 1
      %p36 = por %p34, %p35
      %p37 = scmp.ne.s32.totalorder %s26, %s27
      %p38 = scmp.eq.s32.totalorder %s18, 0
      %p39 = por %p37, %p38
      %p40 = scmp.ne.s32.totalorder %s26, %s27
      %p41 = scmp.eq.s32.totalorder %s19, 1
      %p42 = por %p40, %p41
      %p44 = scmp.ne.s32.totalorder %s27, %s43
      %p45 = scmp.eq.s32.totalorder %s19, 0
      %p46 = por %p44, %p45
      %s47 = ssub.s32 %s13, %s20
      %p48 = scmp.eq.s32.totalorder %s47, 0
      %s50 = sadd.s32 %s49, 1
      %s51 = scalar_select %p48, %s49, %s50
      %p54 = pneg %p48
      %p55 = scmp.eq.s32.totalorder %s13, 1
      %p56 = por %p54, %p55
      %p57 = scmp.ne.s32.totalorder %s49, %s52
      %p58 = scmp.eq.s32.totalorder %s13, 0
      %p59 = por %p57, %p58
      %p60 = scmp.ne.s32.totalorder %s49, %s52
      %p61 = scmp.eq.s32.totalorder %s18, 1
      %p62 = por %p60, %p61
      %p63 = scmp.ne.s32.totalorder %s52, %s53
      %p64 = scmp.eq.s32.totalorder %s18, 0
      %p65 = por %p63, %p64
      %p66 = scmp.ne.s32.totalorder %s52, %s53
      %p67 = scmp.eq.s32.totalorder %s19, 1
      %p68 = por %p66, %p67
      %p70 = scmp.ne.s32.totalorder %s53, %s69
      %p71 = scmp.eq.s32.totalorder %s19, 0
      %p72 = por %p70, %p71
      %p73 = scmp.le.s32.totalorder 1, %s13
      %p74 = scmp.lt.s32.totalorder %s13, 3
      %p75 = pnand %p73, %p74
      %p76 = pneg %p75
      // Predicated region
      $region9: #{tpu_custom_call.1} parent=5 // pred_check
        _
      $region10: #{tpu_custom_call.1} parent=5 // pred_check_branch
        %78 = sbr.rel (%p75) target = $region12
      $region11: #{tpu_custom_call.1} parent=5 // pred_region
        %s79 = ssub.s32 %s13, 1
      $region12: #{tpu_custom_call.1} parent=5 // pred_fallthru
        _
      %p80 = scmp.lt.s32.totalorder %s13, 2
      // Predicated region
      $region13: #{tpu_custom_call.1} parent=5 // pred_check
        %p81 = pneg %p80
      $region14: #{tpu_custom_call.1} parent=5 // pred_check_branch
        %83 = sbr.rel (%p81) target = $region16
      $region15: #{tpu_custom_call.1} parent=5 // pred_region
        // Predicated region
        $region17: #{tpu_custom_call.1} parent=15 // pred_check
          %p84 = pneg %p33
        $region18: #{tpu_custom_call.1} parent=15 // pred_check_branch
          %86 = sbr.rel (%p84) target = $region20
        $region19: #{tpu_custom_call.1} parent=15 // pred_region
          %s87 = sand.u32 %s23, 1
          %s88 = scalar_lea.sflag [#allocation3], %s87
          %s89 = sand.u32 %s23, 1
          %s90 = smul.addr %s89, 64
          %s91 = scalar_lea.vmem [#allocation2], %s90
          %s92 = smul.u32 4, %s13
          %s94 = ssub.s32 1024, 1024
          %95 = vsyncadd %s88, %s94
          %s96 = smul.addr %s92, 2
          %s97 = smul.addr %s96, 128
          %s98 = scalar_lea.hbm %s0, %s97
          %s99 = sshll.u32 %s91, 4
          %s100 = int_to_ptr.vmem [resolvable:$true] %s99
          %105 = dma.hbm_to_vmem [thread:$0]  %s98, 1024, %s100, %s88, 128, 128, 8
        $region20: #{tpu_custom_call.1} parent=15 // pred_fallthru
          _
      $region16: #{tpu_custom_call.1} parent=5 // pred_fallthru
        _
      %p106 = scmp.le.s32.totalorder 1, %s13
      %p107 = scmp.lt.s32.totalorder %s13, 3
      %p108 = pnand %p106, %p107
      %p109 = pneg %p108
      // Predicated region
      $region21: #{tpu_custom_call.1} parent=5 // pred_check
        _
      $region22: #{tpu_custom_call.1} parent=5 // pred_check_branch
        %111 = sbr.rel (%p108) target = $region24
      $region23: #{tpu_custom_call.1} parent=5 // pred_region
        %s112 = ssub.s32 %s13, 1
        %s113 = sand.u32 %s26, 1
        %s114 = scalar_lea.sflag [#allocation3], %s113
        %s115 = sand.u32 %s26, 1
        %s116 = smul.addr %s115, 64
        %s117 = scalar_lea.vmem [#allocation2], %s116
        // Predicated region
        $region25: #{tpu_custom_call.1} parent=23 // pred_check
          %p118 = pneg %p39
        $region26: #{tpu_custom_call.1} parent=23 // pred_check_branch
          %120 = sbr.rel (%p118) target = $region28
        $region27: #{tpu_custom_call.1} parent=23 // pred_region
          %121 = dma.done %s114, 1024
        $region28: #{tpu_custom_call.1} parent=23 // pred_fallthru
          _
        %s122 = sand.u32 %s26, 1
        %s123 = scalar_lea.sflag [#allocation3], %s122
        %s124 = sand.u32 %s26, 1
        %s125 = smul.addr %s124, 64
        %s126 = scalar_lea.vmem [#allocation2], %s125
        %p127 = pneg %p39
        %p128 = pneg %p36
        %p129 = pneg %p65
        %p130 = pneg %p62
        %s131 = sand.u32 %s52, 1
        %s132 = scalar_lea.sflag [#allocation4], %s131
        %s133 = sand.u32 %s52, 1
        %s134 = smul.addr %s133, 96
        %s135 = scalar_lea.vmem [#allocation5], %s134
        %s136 = smul.u32 4, %s18
        %s137 = smul.u32 4, %s18
        %vm138 = vcmask 195584
        %139 = vst.msk [vmem:[%s135] sm:$0xff] %vm138, 0.0
        %140 = vst.msk [vmem:[%s135 + $0x8] sm:$0xff] %vm138, 0.0
        %141 = vst.msk [vmem:[%s135 + $0x10] sm:$0xff] %vm138, 0.0
        %142 = vst.msk [vmem:[%s135 + $0x18] sm:$0xff] %vm138, 0.0
        %143 = vst.msk [vmem:[%s135 + $0x20] sm:$0xff] %vm138, 0.0
        %144 = vst.msk [vmem:[%s135 + $0x28] sm:$0xff] %vm138, 0.0
        %145 = vst.msk [vmem:[%s135 + $0x30] sm:$0xff] %vm138, 0.0
        %146 = vst.msk [vmem:[%s135 + $0x38] sm:$0xff] %vm138, 0.0
        %147 = vst.msk [vmem:[%s135 + $0x40] sm:$0xff] %vm138, 0.0
        %148 = vst.msk [vmem:[%s135 + $0x48] sm:$0xff] %vm138, 0.0
        %149 = vst.msk [vmem:[%s135 + $0x50] sm:$0xff] %vm138, 0.0
        %150 = vst.msk [vmem:[%s135 + $0x58] sm:$0xff] %vm138, 0.0
        %v151 = vld [vmem:[%s117] sm:$0xff]
        %v152 = vld [vmem:[%s117 + $0x8] sm:$0xff]
        %v153 = vld [vmem:[%s117 + $0x10] sm:$0xff]
        %v154 = vld [vmem:[%s117 + $0x18] sm:$0xff]
        %v155 = vld [vmem:[%s117 + $0x20] sm:$0xff]
        %v156 = vld [vmem:[%s117 + $0x28] sm:$0xff]
        %v157 = vld [vmem:[%s117 + $0x30] sm:$0xff]
        %v158 = vld [vmem:[%s117 + $0x38] sm:$0xff]
        %167 = vrot.lane.b32.xlu0 %v151, 4
        %v168 = vpop.permute.xlu0 %167
        %169 = vrot.lane.b32.xlu0 %v152, 4
        %v170 = vpop.permute.xlu0 %169
        %171 = vrot.lane.b32.xlu0 %v153, 4
        %v172 = vpop.permute.xlu0 %171
        %173 = vrot.lane.b32.xlu0 %v154, 4
        %v174 = vpop.permute.xlu0 %173
        %175 = vrot.lane.b32.xlu0 %v155, 4
        %v176 = vpop.permute.xlu0 %175
        %177 = vrot.lane.b32.xlu0 %v156, 4
        %v178 = vpop.permute.xlu0 %177
        %179 = vrot.lane.b32.xlu0 %v157, 4
        %v180 = vpop.permute.xlu0 %179
        %181 = vrot.lane.b32.xlu0 %v158, 4
        %v182 = vpop.permute.xlu0 %181
        %vm191 = vcmask 162848
        %192 = vst.msk [vmem:[%s135 + $0x4] sm:$0xff] %vm191, %v168
        %193 = vst.msk [vmem:[%s135 + $0xc] sm:$0xff] %vm191, %v170
        %194 = vst.msk [vmem:[%s135 + $0x1c] sm:$0xff] %vm191, %v172
        %195 = vst.msk [vmem:[%s135 + $0x24] sm:$0xff] %vm191, %v174
        %196 = vst.msk [vmem:[%s135 + $0x34] sm:$0xff] %vm191, %v176
        %197 = vst.msk [vmem:[%s135 + $0x3c] sm:$0xff] %vm191, %v178
        %198 = vst.msk [vmem:[%s135 + $0x4c] sm:$0xff] %vm191, %v180
        %199 = vst.msk [vmem:[%s135 + $0x54] sm:$0xff] %vm191, %v182
        %s200 = sand.u32 %s52, 1
        %s201 = scalar_lea.sflag [#allocation4], %s200
        %s202 = sand.u32 %s52, 1
        %s203 = smul.addr %s202, 96
        %s204 = scalar_lea.vmem [#allocation5], %s203
        // Predicated region
        $region29: #{tpu_custom_call.1} parent=23 // pred_check
          %p205 = pneg %p62
        $region30: #{tpu_custom_call.1} parent=23 // pred_check_branch
          %207 = sbr.rel (%p205) target = $region32
        $region31: #{tpu_custom_call.1} parent=23 // pred_region
          %s208 = smul.u32 4, %s18
          %s210 = ssub.s32 1536, 1536
          %211 = vsyncadd %s201, %s210
          %s212 = smul.addr %s208, 3
          %s213 = smul.addr %s212, 128
          %s214 = scalar_lea.hbm %s1, %s213
          %s215 = sshll.u32 %s204, 4
          %s216 = int_to_ptr.vmem [resolvable:$true] %s215
          %221 = dma.vmem_to_hbm [thread:$0]  %s216, 1536, %s214, %s201, 128, 128, 8
        $region32: #{tpu_custom_call.1} parent=23 // pred_fallthru
          _
      $region24: #{tpu_custom_call.1} parent=5 // pred_fallthru
        _
      %p222 = scmp.le.s32.totalorder 2, %s13
      // Predicated region
      $region33: #{tpu_custom_call.1} parent=5 // pred_check
        %p223 = pneg %p222
      $region34: #{tpu_custom_call.1} parent=5 // pred_check_branch
        %225 = sbr.rel (%p223) target = $region36
      $region35: #{tpu_custom_call.1} parent=5 // pred_region
        %s226 = ssub.s32 %s13, 2
        // Predicated region
        $region37: #{tpu_custom_call.1} parent=35 // pred_check
          %p227 = pneg %p68
        $region38: #{tpu_custom_call.1} parent=35 // pred_check_branch
          %229 = sbr.rel (%p227) target = $region40
        $region39: #{tpu_custom_call.1} parent=35 // pred_region
          %s230 = sand.u32 %s53, 1
          %s231 = scalar_lea.sflag [#allocation4], %s230
          %s232 = sand.u32 %s53, 1
          %s233 = smul.addr %s232, 96
          %s234 = scalar_lea.vmem [#allocation5], %s233
          %235 = dma.done %s231, 1536
        $region40: #{tpu_custom_call.1} parent=35 // pred_fallthru
          _
      $region36: #{tpu_custom_call.1} parent=5 // pred_fallthru
        _
    $region6: #{tpu_custom_call.1} parent=1 // loop_footer
      %s17 = sadd.s32 1, %s13
    $region7: #{tpu_custom_call.1} parent=1 // loop_footer_branch
      %12 = sbr.rel target = $region3
    $region8: #{tpu_custom_call.1} parent=1 // loop_exit
      _
    %236 = vsyncpa [#allocation3], 1
    %s237 = scalar_lea.sflag [#allocation3], 1
    %238 = vsyncpa %s237, 1
    %239 = vsyncpa [#allocation4], 1
    %s240 = scalar_lea.sflag [#allocation4], 1
    %241 = vsyncpa %s240, 1

</llo_original>
